<compile_context>
chip_gen: v7x
topology: tpu7x:2x2x1
jax: 0.10.0
libtpu: 0.0.40
codegen_flags: <defaults>
</compile_context>

<pallas_src>
import math

import jax
import jax.numpy as jnp
from jax.experimental import pallas as pl
from jax.experimental.pallas import tpu as pltpu


_LANE = 128        # lane width (last-dim alignment)
_DEF_TM = 1024     # stage-2 row tile target (multiple of 128 and 256)
_DEF_TN = 512      # output-feature tile target (clamps to fout_pad, usually 128)
_DEF_TK = 1024     # stage-2 reduction tile target


def _round_up(x, m):
    return ((x + m - 1) // m) * m


def _pad2d(x, rows, cols):
    r, c = x.shape
    if r == rows and c == cols:
        return x
    return jnp.pad(x, ((0, rows - r), (0, cols - c)))


def _pick_tile(dim_pad, target):
    """Largest multiple of 128 that divides dim_pad and is <= target.

    dim_pad must already be a multiple of 128, so 128 always divides and no
    padding beyond lane alignment is ever introduced by the tile choice.
    """
    units = dim_pad // _LANE
    best = 1
    for d in range(1, units + 1):
        if units % d == 0 and d * _LANE <= target:
            best = d
    return best * _LANE


def _vmem_limit_bytes():
    """Per-generation scoped-VMEM budget: half of physical, clamped 32..96 MiB.

    v7x (64 MiB physical)  -> 32 MiB; v5e/v6e (128 MiB) -> 64 MiB.
    """
    cap = 64 * 1024 * 1024
    try:
        cap = int(pltpu.get_tpu_info().vmem_capacity_bytes)
    except Exception:
        pass
    return int(min(max(cap // 2, 32 * 1024 * 1024), 96 * 1024 * 1024))


# ----------------------------------------------------------------------------
# Kernels
# ----------------------------------------------------------------------------

def _single_k_kernel(a_ref, b_ref, o_ref):
    """Whole-K matmul for one (i, j) tile; no accumulation path needed."""
    o_ref[...] = jnp.dot(a_ref[...], b_ref[...],
                         preferred_element_type=jnp.float32).astype(o_ref.dtype)


def _make_resident_b_kernel(tk):
    """Multi-K matmul with the full-K B column block resident in VMEM.

    The (f32) output block is resident across the reduction axis, so we
    accumulate directly into it (no scratch accumulator, no final copy).
    """
    def kernel(a_ref, b_ref, o_ref):
        kk = pl.program_id(2)

        @pl.when(kk == 0)
        def _():
            o_ref[...] = jnp.zeros_like(o_ref)

        k0 = pl.multiple_of(kk * tk, tk)
        o_ref[...] += jnp.dot(a_ref[...], b_ref[pl.ds(k0, tk), :],
                              preferred_element_type=jnp.float32)

    return kernel


def _streamed_kernel(a_ref, b_ref, o_ref, acc_ref):
    """Fallback multi-K matmul streaming (tk, tn) B tiles, f32 scratch acc."""
    kk = pl.program_id(2)

    @pl.when(kk == 0)
    def _():
        acc_ref[...] = jnp.zeros_like(acc_ref)

    acc_ref[...] += jnp.dot(a_ref[...], b_ref[...],
                            preferred_element_type=jnp.float32)

    @pl.when(kk == pl.num_programs(2) - 1)
    def _():
        o_ref[...] = acc_ref[...].astype(o_ref.dtype)


# ----------------------------------------------------------------------------
# Tiled matmul wrapper (lane-dense, pipelined)
# ----------------------------------------------------------------------------

def pallas_matmul(a, b, *, out_dtype, tm, tn, tk, vmem_limit):
    """(M, K) @ (K, N).  All dims must already be multiples of the tiles."""
    m, k = a.shape
    k2, n = b.shape
    assert k == k2 and m % tm == 0 and n % tn == 0 and k % tk == 0
    gi, gj, gk = m // tm, n // tn, k // tk

    a_item = a.dtype.itemsize
    b_item = b.dtype.itemsize
    o_item = jnp.dtype(out_dtype).itemsize
    flops = 2 * m * n * k

    if gk == 1:
        # Single-K path: no zero-init / accumulate / finalize at all.
        b_fetches = 1 if gj == 1 else gi
        bytes_accessed = (m * k * a_item
                          + b_fetches * k * n * b_item
                          + m * n * o_item)
        return pl.pallas_call(
            _single_k_kernel,
            out_shape=jax.ShapeDtypeStruct((m, n), out_dtype),
            grid_spec=pltpu.PrefetchScalarGridSpec(
                num_scalar_prefetch=0,
                grid=(gi, gj),
                in_specs=[
                    pl.BlockSpec((tm, k), lambda i, j: (i, 0)),
                    pl.BlockSpec((k, tn), lambda i, j: (0, j)),
                ],
                out_specs=pl.BlockSpec((tm, tn), lambda i, j: (i, j)),
            ),
            compiler_params=pltpu.CompilerParams(
                dimension_semantics=("parallel", "parallel"),
                vmem_limit_bytes=vmem_limit),
            cost_estimate=pl.CostEstimate(
                flops=flops, transcendentals=0, bytes_accessed=bytes_accessed),
        )(a, b)

    out_is_f32 = jnp.dtype(out_dtype) == jnp.dtype(jnp.float32)
    # Resident full-K B column block (Pallas double-buffers inputs) + A tile
    # + resident f32 output tile must fit the scoped VMEM budget.
    resident_vmem = (2 * k * tn * b_item      # B column block (2 buffers)
                     + 2 * tm * tk * a_item   # A tile, double-buffered
                     + 2 * tm * tn * 4)       # f32 output tile
    if out_is_f32 and resident_vmem <= int(0.75 * vmem_limit):
        # j outermost so the B block index (0, j) only changes gj times:
        # B is fetched exactly once per output-column tile.
        bytes_accessed = (gj * m * k * a_item
                          + k * n * b_item
                          + m * n * o_item)
        return pl.pallas_call(
            _make_resident_b_kernel(tk),
            out_shape=jax.ShapeDtypeStruct((m, n), out_dtype),
            grid_spec=pltpu.PrefetchScalarGridSpec(
                num_scalar_prefetch=0,
                grid=(gj, gi, gk),
                in_specs=[
                    pl.BlockSpec((tm, tk), lambda j, i, kk: (i, kk)),
                    pl.BlockSpec((k, tn), lambda j, i, kk: (0, j)),
                ],
                out_specs=pl.BlockSpec((tm, tn), lambda j, i, kk: (i, j)),
            ),
            compiler_params=pltpu.CompilerParams(
                dimension_semantics=("parallel", "parallel", "arbitrary"),
                vmem_limit_bytes=vmem_limit),
            cost_estimate=pl.CostEstimate(
                flops=flops, transcendentals=0, bytes_accessed=bytes_accessed),
        )(a, b)

    # Fallback: stream (tk, tn) B tiles with an f32 scratch accumulator.
    bytes_accessed = (gj * m * k * a_item
                      + gi * k * n * b_item
                      + m * n * o_item)
    return pl.pallas_call(
        _streamed_kernel,
        out_shape=jax.ShapeDtypeStruct((m, n), out_dtype),
        grid_spec=pltpu.PrefetchScalarGridSpec(
            num_scalar_prefetch=0,
            grid=(gi, gj, gk),
            in_specs=[
                pl.BlockSpec((tm, tk), lambda i, j, kk: (i, kk)),
                pl.BlockSpec((tk, tn), lambda i, j, kk: (kk, j)),
            ],
            out_specs=pl.BlockSpec((tm, tn), lambda i, j, kk: (i, j)),
            scratch_shapes=[pltpu.VMEM((tm, tn), jnp.float32)],
        ),
        compiler_params=pltpu.CompilerParams(
            dimension_semantics=("parallel", "parallel", "arbitrary"),
            vmem_limit_bytes=vmem_limit),
        cost_estimate=pl.CostEstimate(
            flops=flops, transcendentals=0, bytes_accessed=bytes_accessed),
    )(a, b)


# ----------------------------------------------------------------------------
# GCN layer forward
# ----------------------------------------------------------------------------

def gcn_layer(x, weight, a_norm, *, compute_dtype=jnp.bfloat16,
              tm=_DEF_TM, tn=_DEF_TN, tk=_DEF_TK):
    """GCN forward: out = A_norm @ (x @ W), as two tiled Pallas matmuls.

    `a_norm` may be passed either as the logical (N, N) matrix or already
    lane-padded (to a multiple of 128) and cast to `compute_dtype` (see
    normalize_adj(out_dtype=..., pad_to=128)); in the latter case no extra
    O(N^2) HBM pad+cast pass is paid here.
    """
    n, f_in = x.shape
    f_in_w, f_out = weight.shape
    assert f_in == f_in_w

    cd = jnp.dtype(compute_dtype)
    n_pad = _round_up(n, _LANE)
    fin_pad = _round_up(f_in, _LANE)
    fout_pad = _round_up(f_out, _LANE)
    assert a_norm.shape in ((n, n), (n_pad, n_pad))

    vmem_limit = _vmem_limit_bytes()

    # Tiles divide the lane-padded dims; never pad dims up to the tile size.
    t_row = _pick_tile(n_pad, tm)
    if n_pad // t_row < 2 and n_pad // _LANE >= 2:
        # >= 2 row tiles so both v7x TensorCores get work on the parallel axes.
        t_row = _pick_tile(n_pad, t_row // 2)
    t_fout = _pick_tile(fout_pad, tn)
    t_node_k = _pick_tile(n_pad, tk)

    # Stage-1 reduction: keep all of F_in in one block when it comfortably
    # fits VMEM (drops the accumulate/init/finalize path); otherwise tile it.
    t_fin = fin_pad
    stage1_bytes = 2 * (t_row * fin_pad + fin_pad * t_fout
                        + t_row * t_fout) * cd.itemsize
    if stage1_bytes > int(0.5 * vmem_limit):
        t_fin = _pick_tile(fin_pad, tk)

    x_p = _pad2d(x, n_pad, fin_pad).astype(cd)
    w_p = _pad2d(weight, fin_pad, fout_pad).astype(cd)
    if a_norm.shape == (n_pad, n_pad) and a_norm.dtype == cd:
        a_p = a_norm  # already lane-padded and cast: no extra HBM pass
    else:
        a_p = _pad2d(a_norm, n_pad, n_pad).astype(cd)

    # Stage 1: support = x @ W  (computed once, stored lane-dense).
    support = pallas_matmul(x_p, w_p, out_dtype=cd,
                            tm=t_row, tn=t_fout, tk=t_fin,
                            vmem_limit=vmem_limit)

    # Stage 2: out = A_norm @ support (HBM-bound on the (N, N) stream; the
    # support column block stays VMEM-resident and is fetched once per j).
    out_p = pallas_matmul(a_p, support, out_dtype=jnp.float32,
                          tm=t_row, tn=t_fout, tk=t_node_k,
                          vmem_limit=vmem_limit)
    return out_p[:n, :f_out]


def normalize_adj(A, *, out_dtype=None, pad_to=None):
    """A_norm = D^{-1/2} (A + I) D^{-1/2} via O(N^2) broadcast scaling.

    Optionally casts to `out_dtype` and zero-pads to a multiple of `pad_to`
    in the same fused pass, so gcn_layer never pays a separate O(N^2) HBM
    read/write just to pad+cast the adjacency matrix.
    """
    n = A.shape[0]
    A_hat = A + jnp.eye(n, dtype=A.dtype)
    d_inv_sqrt = jax.lax.rsqrt(jnp.sum(A_hat, axis=1))
    A_norm = A_hat * d_inv_sqrt[:, None] * d_inv_sqrt[None, :]
    if out_dtype is not None:
        A_norm = A_norm.astype(out_dtype)
    if pad_to is not None:
        n_pad = _round_up(n, pad_to)
        A_norm = _pad2d(A_norm, n_pad, n_pad)
    return A_norm


def xavier_uniform(key, shape, dtype=jnp.float32):
    """Matches torch.nn.init.xavier_uniform_ (gain=1)."""
    fan_in, fan_out = shape
    bound = math.sqrt(6.0 / (fan_in + fan_out))
    return jax.random.uniform(key, shape, dtype=dtype, minval=-bound, maxval=bound)


def _check(out, x, weight, a_norm_f32):
    """Compare against bf16-emulated and pure-f32 references."""
    xb = x.astype(jnp.bfloat16).astype(jnp.float32)
    wb = weight.astype(jnp.bfloat16).astype(jnp.float32)
    ab = a_norm_f32.astype(jnp.bfloat16).astype(jnp.float32)
    support_ref = jnp.dot(xb, wb, precision=jax.lax.Precision.HIGHEST)
    support_ref = support_ref.astype(jnp.bfloat16).astype(jnp.float32)
    ref = jnp.dot(ab, support_ref, precision=jax.lax.Precision.HIGHEST)
    assert jnp.allclose(out, ref, atol=1e-2, rtol=1e-2)
    ref_f32 = a_norm_f32 @ (x @ weight)
    assert jnp.allclose(out, ref_f32, atol=5e-2, rtol=5e-2)


if __name__ == "__main__":
    key = jax.random.PRNGKey(0)
    k_w, k_x, k_a, k_w2, k_x2, k_a2 = jax.random.split(key, 6)

    # --- Test 1: tiny module-sized shapes (single-K path, grid (1, 1)) ------
    N, F_IN, F_OUT = 8, 32, 16
    weight = xavier_uniform(k_w, (F_IN, F_OUT))
    x = jax.random.normal(k_x, (N, F_IN), dtype=jnp.float32)
    a_rand = (jax.random.uniform(k_a, (N, N)) > 0.5).astype(jnp.float32)
    A = jnp.maximum(a_rand, a_rand.T)
    A = A * (1.0 - jnp.eye(N, dtype=jnp.float32))

    A_norm_f32 = normalize_adj(A)                                   # reference
    A_norm_bf16 = normalize_adj(A, out_dtype=jnp.bfloat16, pad_to=_LANE)  # kernel

    out = gcn_layer(x, weight, A_norm_bf16)
    out = jax.block_until_ready(out)
    assert out.shape == (N, F_OUT)
    _check(out, x, weight, A_norm_f32)

    # --- Test 2: exercise the resident-B multi-K stage-2 path ---------------
    N2, F_IN2, F_OUT2 = 512, 64, 32
    weight2 = xavier_uniform(k_w2, (F_IN2, F_OUT2))
    x2 = jax.random.normal(k_x2, (N2, F_IN2), dtype=jnp.float32)
    a_rand2 = (jax.random.uniform(k_a2, (N2, N2)) > 0.5).astype(jnp.float32)
    A2 = jnp.maximum(a_rand2, a_rand2.T)
    A2 = A2 * (1.0 - jnp.eye(N2, dtype=jnp.float32))

    A2_norm_f32 = normalize_adj(A2)
    A2_norm_bf16 = normalize_adj(A2, out_dtype=jnp.bfloat16, pad_to=_LANE)

    out2 = gcn_layer(x2, weight2, A2_norm_bf16, tm=128, tn=128, tk=128)
    out2 = jax.block_until_ready(out2)
    assert out2.shape == (N2, F_OUT2)
    _check(out2, x2, weight2, A2_norm_f32)

    print("KERNEL_OK")
</pallas_src>

<mosaic_0001>
module attributes {stable_mosaic.version = 11 : i64} {
  func.func @_single_k_kernel(%arg0: i32, %arg1: i32, %arg2: memref<128x128xbf16, #tpu.memory_space<vmem>>, %arg3: memref<128x128xbf16, #tpu.memory_space<vmem>>, %arg4: memref<128x128xbf16, #tpu.memory_space<vmem>>) attributes {dimension_semantics = [#tpu.dimension_semantics<parallel>, #tpu.dimension_semantics<parallel>], iteration_bounds = array<i64: 1, 1>, scalar_prefetch = 0 : i64, scratch_operands = 0 : i64, tpu.core_type = #tpu.core_type<tc>, window_params = [{transform_indices = @transform_0, window_bounds = array<i64: 128, 128>}, {transform_indices = @transform_1, window_bounds = array<i64: 128, 128>}, {transform_indices = @transform_2, window_bounds = array<i64: 128, 128>}]} {
    %c0 = arith.constant 0 : index
    %c0_0 = arith.constant 0 : index
    %0 = vector.load %arg2[%c0, %c0_0] : memref<128x128xbf16, #tpu.memory_space<vmem>>, vector<128x128xbf16>
    %c0_1 = arith.constant 0 : index
    %c0_2 = arith.constant 0 : index
    %1 = vector.load %arg3[%c0_1, %c0_2] : memref<128x128xbf16, #tpu.memory_space<vmem>>, vector<128x128xbf16>
    %cst = arith.constant dense<0.000000e+00> : vector<128x128xf32>
    %2 = tpu.matmul %0, %1, %cst {dimension_numbers = #tpu.dot_dimension_numbers<[1], [0], [0], [1], [0, 0, 1, 1], [], []>} : vector<128x128xbf16>, vector<128x128xbf16>, vector<128x128xf32> -> vector<128x128xf32>
    %3 = arith.truncf %2 : vector<128x128xf32> to vector<128x128xbf16>
    %c0_3 = arith.constant 0 : index
    %c0_4 = arith.constant 0 : index
    %4 = vector.load %arg4[%c0_3, %c0_4] : memref<128x128xbf16, #tpu.memory_space<vmem>>, vector<128x128xbf16>
    tpu.vector_store %arg4[%c0_3, %c0_4], %3 {strides = array<i32>} : memref<128x128xbf16, #tpu.memory_space<vmem>>, vector<128x128xbf16>,
    return
  }
  func.func @transform_0(%arg0: i32, %arg1: i32) -> (i32, i32) {
    %c0_i32 = arith.constant 0 : i32
    %c0_i32_0 = arith.constant 0 : i32
    return %arg0, %c0_i32 : i32, i32
  }
  func.func @transform_1(%arg0: i32, %arg1: i32) -> (i32, i32) {
    %c0_i32 = arith.constant 0 : i32
    %c0_i32_0 = arith.constant 0 : i32
    return %c0_i32, %arg1 : i32, i32
  }
  func.func @transform_2(%arg0: i32, %arg1: i32) -> (i32, i32) {
    %c0_i32 = arith.constant 0 : i32
    return %arg0, %arg1 : i32, i32
  }
}

</mosaic_0001>

<llo_original>
// kernel: tpu_custom_call.1
$region0: #{tpu_custom_call.1}
  #allocation0 [shape = 'u32[]', space=smem, size = 0x4, offset = 0x4, fixed_abs, tag = 'smem constant byte address 0x4 - core index']
  #allocation1 [shape = 'u32[144,128]{1,0:T(1,128)}', space=vmem, size = 0x12000, scoped, tag = 'internal scratch']
  %s0 = inlined_call_operand.hbm [shape: bf16[128,128], index: 0, kind: input, shape index: {}]
  %s1 = inlined_call_operand.hbm [shape: bf16[128,128], index: 1, kind: input, shape index: {}]
  %s2 = inlined_call_operand.hbm [shape: bf16[128,128], index: 2, kind: output, shape index: {}]
  %s3 = sld [smem:[#allocation0]]
  $region26: #{tpu_custom_call.1} parent=0
    _
  %s5 = ssub.s32 1, %s3
  %s6 = scalar_select 0, %s5, %s3
  $region1: #{tpu_custom_call.1} parent=0
    #allocation2 [shape = 'u8[32768]{0}', space=vmem, size = 0x8000, scoped, tag = 'input window, operand 0, single buffered']
    #allocation3 [shape = 's32[1]{0}', space=sflag, size = 0x4, scoped, tag = 'scoped memory for tpu_custom_call.1']
    #allocation4 [shape = 's32[1]{0}', space=sflag, size = 0x4, scoped, tag = 'scoped memory for tpu_custom_call.1']
    #allocation5 [shape = 'u8[32768]{0}', space=vmem, size = 0x8000, scoped, tag = 'input window, operand 1, single buffered']
    #allocation6 [shape = 's32[1]{0}', space=sflag, size = 0x4, scoped, tag = 'scoped memory for tpu_custom_call.1']
    #allocation7 [shape = 'u8[32768]{0}', space=vmem, size = 0x8000, scoped, tag = 'output window, operand 0, single buffered']
    %7 = vsyncpa [#allocation3], 0
    %8 = vsyncpa [#allocation6], 0
    %9 = vsyncpa [#allocation4], 0
    // Predicated region
    $region2: #{tpu_custom_call.1} parent=1 // pred_check
      _
    $region3: #{tpu_custom_call.1} parent=1 // pred_check_branch
      %11 = sbr.rel (0) target = $region5
    $region4: #{tpu_custom_call.1} parent=1 // pred_region
      %s13 = ssub.s32 1024, 1024
      %14 = vsyncadd [#allocation3], %s13
      %s15 = sshll.u32 [#allocation2], 4
      %s16 = int_to_ptr.vmem [resolvable:$true] %s15
      %21 = dma.hbm_to_vmem [thread:$0]  %s0, 1024, %s16, [#allocation3], 64, 64, 4
    $region5: #{tpu_custom_call.1} parent=1 // pred_fallthru
      _
    // Predicated region
    $region6: #{tpu_custom_call.1} parent=1 // pred_check
      _
    $region7: #{tpu_custom_call.1} parent=1 // pred_check_branch
      %23 = sbr.rel (0) target = $region9
    $region8: #{tpu_custom_call.1} parent=1 // pred_region
      %s25 = ssub.s32 1024, 1024
      %26 = vsyncadd [#allocation6], %s25
      %s27 = sshll.u32 [#allocation5], 4
      %s28 = int_to_ptr.vmem [resolvable:$true] %s27
      %33 = dma.hbm_to_vmem [thread:$0]  %s1, 1024, %s28, [#allocation6], 64, 64, 4
    $region9: #{tpu_custom_call.1} parent=1 // pred_fallthru
      _
    // Predicated region
    $region10: #{tpu_custom_call.1} parent=1 // pred_check
      _
    $region11: #{tpu_custom_call.1} parent=1 // pred_check_branch
      %35 = sbr.rel (0) target = $region13
    $region12: #{tpu_custom_call.1} parent=1 // pred_region
      %36 = dma.done [#allocation3], 1024
    $region13: #{tpu_custom_call.1} parent=1 // pred_fallthru
      _
    // Predicated region
    $region14: #{tpu_custom_call.1} parent=1 // pred_check
      _
    $region15: #{tpu_custom_call.1} parent=1 // pred_check_branch
      %38 = sbr.rel (0) target = $region17
    $region16: #{tpu_custom_call.1} parent=1 // pred_region
      %39 = dma.done [#allocation6], 1024
    $region17: #{tpu_custom_call.1} parent=1 // pred_fallthru
      _
    %v41 = vld [vmem:[#allocation2] sm:$0xf]
    %v42 = vld [vmem:[#allocation2 + $0x4] sm:$0xf]
    %v43 = vld [vmem:[#allocation2 + $0x8] sm:$0xf]
    %v44 = vld [vmem:[#allocation2 + $0xc] sm:$0xf]
    %v45 = vld [vmem:[#allocation2 + $0x10] sm:$0xf]
    %v46 = vld [vmem:[#allocation2 + $0x14] sm:$0xf]
    %v47 = vld [vmem:[#allocation2 + $0x18] sm:$0xf]
    %v48 = vld [vmem:[#allocation2 + $0x1c] sm:$0xf]
    %v49 = vld [vmem:[#allocation2 + $0x20] sm:$0xf]
    %v50 = vld [vmem:[#allocation2 + $0x24] sm:$0xf]
    %v51 = vld [vmem:[#allocation2 + $0x28] sm:$0xf]
    %v52 = vld [vmem:[#allocation2 + $0x2c] sm:$0xf]
    %v53 = vld [vmem:[#allocation2 + $0x30] sm:$0xf]
    %v54 = vld [vmem:[#allocation2 + $0x34] sm:$0xf]
    %v55 = vld [vmem:[#allocation2 + $0x38] sm:$0xf]
    %v56 = vld [vmem:[#allocation2 + $0x3c] sm:$0xf]
    %v57 = vld [vmem:[#allocation5] sm:$0xf]
    %v58 = vld [vmem:[#allocation5 + $0x4] sm:$0xf]
    %v59 = vld [vmem:[#allocation5 + $0x8] sm:$0xf]
    %v60 = vld [vmem:[#allocation5 + $0xc] sm:$0xf]
    %v61 = vld [vmem:[#allocation5 + $0x10] sm:$0xf]
    %v62 = vld [vmem:[#allocation5 + $0x14] sm:$0xf]
    %v63 = vld [vmem:[#allocation5 + $0x18] sm:$0xf]
    %v64 = vld [vmem:[#allocation5 + $0x1c] sm:$0xf]
    %v65 = vld [vmem:[#allocation5 + $0x20] sm:$0xf]
    %v66 = vld [vmem:[#allocation5 + $0x24] sm:$0xf]
    %v67 = vld [vmem:[#allocation5 + $0x28] sm:$0xf]
    %v68 = vld [vmem:[#allocation5 + $0x2c] sm:$0xf]
    %v69 = vld [vmem:[#allocation5 + $0x30] sm:$0xf]
    %v70 = vld [vmem:[#allocation5 + $0x34] sm:$0xf]
    %v71 = vld [vmem:[#allocation5 + $0x38] sm:$0xf]
    %v72 = vld [vmem:[#allocation5 + $0x3c] sm:$0xf]
    %v89 = vunpack.c.l.b16 %v41
    %v90 = vunpack.c.l.b16 %v42
    %v91 = vunpack.c.l.b16 %v43
    %v92 = vunpack.c.l.b16 %v44
    %v93 = vunpack.c.l.b16 %v45
    %v94 = vunpack.c.l.b16 %v46
    %v95 = vunpack.c.l.b16 %v47
    %v96 = vunpack.c.l.b16 %v48
    %v97 = vunpack.c.l.b16 %v49
    %v98 = vunpack.c.l.b16 %v50
    %v99 = vunpack.c.l.b16 %v51
    %v100 = vunpack.c.l.b16 %v52
    %v101 = vunpack.c.l.b16 %v53
    %v102 = vunpack.c.l.b16 %v54
    %v103 = vunpack.c.l.b16 %v55
    %v104 = vunpack.c.l.b16 %v56
    %v105 = vpack.c.b16 %v90, %v89
    %v106 = vpack.c.b16 %v92, %v91
    %v107 = vpack.c.b16 %v94, %v93
    %v108 = vpack.c.b16 %v96, %v95
    %v109 = vpack.c.b16 %v98, %v97
    %v110 = vpack.c.b16 %v100, %v99
    %v111 = vpack.c.b16 %v102, %v101
    %v112 = vpack.c.b16 %v104, %v103
    %v137 = vunpack.c.l.b16 %v57
    %v138 = vunpack.c.l.b16 %v58
    %v139 = vunpack.c.l.b16 %v59
    %v140 = vunpack.c.l.b16 %v60
    %v141 = vunpack.c.l.b16 %v61
    %v142 = vunpack.c.l.b16 %v62
    %v143 = vunpack.c.l.b16 %v63
    %v144 = vunpack.c.l.b16 %v64
    %v145 = vunpack.c.l.b16 %v65
    %v146 = vunpack.c.l.b16 %v66
    %v147 = vunpack.c.l.b16 %v67
    %v148 = vunpack.c.l.b16 %v68
    %v149 = vunpack.c.l.b16 %v69
    %v150 = vunpack.c.l.b16 %v70
    %v151 = vunpack.c.l.b16 %v71
    %v152 = vunpack.c.l.b16 %v72
    %v153 = vpack.c.b16 %v138, %v137
    %v154 = vpack.c.b16 %v140, %v139
    %v155 = vpack.c.b16 %v142, %v141
    %v156 = vpack.c.b16 %v144, %v143
    %v157 = vpack.c.b16 %v146, %v145
    %v158 = vpack.c.b16 %v148, %v147
    %v159 = vpack.c.b16 %v150, %v149
    %v160 = vpack.c.b16 %v152, %v151
    %169 = vmatprep.subr.bf16.mxu0 0
    %170 = vmatpush1.bf16.msra.mxu0 %v153
    %171 = vmatprep.subr.bf16.mxu0 0
    %172 = vmatpush1.bf16.msra.mxu0 %v154
    %173 = vmatprep.subr.bf16.mxu0 0
    %174 = vmatpush1.bf16.msra.mxu0 %v155
    %175 = vmatprep.subr.bf16.mxu0 0
    %176 = vmatpush1.bf16.msra.mxu0 %v156
    %177 = vmatprep.subr.bf16.mxu0 0
    %178 = vmatpush1.bf16.msra.mxu0 %v157
    %179 = vmatprep.subr.bf16.mxu0 0
    %180 = vmatpush1.bf16.msra.mxu0 %v158
    %181 = vmatprep.subr.bf16.mxu0 0
    %182 = vmatpush1.bf16.msra.mxu0 %v159
    %183 = vmatprep.subr.bf16.mxu0 0
    %184 = vmatpush1.bf16.msra.mxu0 %v160
    %185 = vmatprep.subr.bf16.mxu0 0
    %186 = vmatpush1.bf16.msra.mxu0 0
    %187 = vmatprep.subr.bf16.mxu0 0
    %188 = vmatpush1.bf16.msra.mxu0 0
    %189 = vmatprep.subr.bf16.mxu0 0
    %190 = vmatpush1.bf16.msra.mxu0 0
    %191 = vmatprep.subr.bf16.mxu0 0
    %192 = vmatpush1.bf16.msra.mxu0 0
    %193 = vmatprep.subr.bf16.mxu0 0
    %194 = vmatpush1.bf16.msra.mxu0 0
    %195 = vmatprep.subr.bf16.mxu0 0
    %196 = vmatpush1.bf16.msra.mxu0 0
    %197 = vmatprep.subr.bf16.mxu0 0
    %198 = vmatpush1.bf16.msra.mxu0 0
    %199 = vmatprep.subr.bf16.mxu0 0
    %200 = vmatpush1.bf16.msra.mxu0 0
    %201 = vmatprep.mubr.bf16.mxu0 0
    %202 = vmatmul.mubr.bf16.gmra.mrb[0].mxu0 %v105
    %v203 = vpop.f32.mrb[0].mxu0
    %v204 = vadd.f32 0.0, %v203
    %v205 = vpop.f32.mrb[0].mxu0
    %v206 = vpop.f32.mrb[0].mxu0
    %v207 = vadd.f32 0.0, %v206
    %v208 = vpop.f32.mrb[0].mxu0
    %209 = vmatprep.mubr.bf16.mxu0 0
    %210 = vmatmul.mubr.bf16.gmra.mrb[0].mxu0 %v106
    %v211 = vpop.f32.mrb[0].mxu0
    %v212 = vadd.f32 0.0, %v211
    %v213 = vpop.f32.mrb[0].mxu0
    %v214 = vpop.f32.mrb[0].mxu0
    %v215 = vadd.f32 0.0, %v214
    %v216 = vpop.f32.mrb[0].mxu0
    %217 = vmatprep.mubr.bf16.mxu0 0
    %218 = vmatmul.mubr.bf16.gmra.mrb[0].mxu0 %v107
    %v219 = vpop.f32.mrb[0].mxu0
    %v220 = vadd.f32 0.0, %v219
    %v221 = vpop.f32.mrb[0].mxu0
    %v222 = vpop.f32.mrb[0].mxu0
    %v223 = vadd.f32 0.0, %v222
    %v224 = vpop.f32.mrb[0].mxu0
    %225 = vmatprep.mubr.bf16.mxu0 0
    %226 = vmatmul.mubr.bf16.gmra.mrb[0].mxu0 %v108
    %v227 = vpop.f32.mrb[0].mxu0
    %v228 = vadd.f32 0.0, %v227
    %v229 = vpop.f32.mrb[0].mxu0
    %v230 = vpop.f32.mrb[0].mxu0
    %v231 = vadd.f32 0.0, %v230
    %v232 = vpop.f32.mrb[0].mxu0
    %233 = vmatprep.mubr.bf16.mxu0 0
    %234 = vmatmul.mubr.bf16.gmra.mrb[0].mxu0 %v109
    %v235 = vpop.f32.mrb[0].mxu0
    %v236 = vadd.f32 0.0, %v235
    %v237 = vpop.f32.mrb[0].mxu0
    %v238 = vpop.f32.mrb[0].mxu0
    %v239 = vadd.f32 0.0, %v238
    %v240 = vpop.f32.mrb[0].mxu0
    %241 = vmatprep.mubr.bf16.mxu0 0
    %242 = vmatmul.mubr.bf16.gmra.mrb[0].mxu0 %v110
    %v243 = vpop.f32.mrb[0].mxu0
    %v244 = vadd.f32 0.0, %v243
    %v245 = vpop.f32.mrb[0].mxu0
    %v246 = vpop.f32.mrb[0].mxu0
    %v247 = vadd.f32 0.0, %v246
    %v248 = vpop.f32.mrb[0].mxu0
    %249 = vmatprep.mubr.bf16.mxu0 0
    %250 = vmatmul.mubr.bf16.gmra.mrb[0].mxu0 %v111
    %v251 = vpop.f32.mrb[0].mxu0
    %v252 = vadd.f32 0.0, %v251
    %v253 = vpop.f32.mrb[0].mxu0
    %v254 = vpop.f32.mrb[0].mxu0
    %v255 = vadd.f32 0.0, %v254
    %v256 = vpop.f32.mrb[0].mxu0
    %257 = vmatprep.mubr.bf16.mxu0 0
    %258 = vmatmul.mubr.bf16.gmra.mrb[0].mxu0 %v112
    %v259 = vpop.f32.mrb[0].mxu0
    %v260 = vadd.f32 0.0, %v259
    %v261 = vpop.f32.mrb[0].mxu0
    %v262 = vpop.f32.mrb[0].mxu0
    %v263 = vadd.f32 0.0, %v262
    %v264 = vpop.f32.mrb[0].mxu0
    %265 = vdwg.mxu0
    %v266 = vpack.c.bf16 %v207, %v204
    %v267 = vpack.c.bf16 %v215, %v212
    %v268 = vpack.c.bf16 %v223, %v220
    %v269 = vpack.c.bf16 %v231, %v228
    %v270 = vpack.c.bf16 %v239, %v236
    %v271 = vpack.c.bf16 %v247, %v244
    %v272 = vpack.c.bf16 %v255, %v252
    %v273 = vpack.c.bf16 %v263, %v260
    %v282 = vunpack.c.l.b16 %v266
    %v283 = vunpack.c.h.b16 %v266
    %v284 = vunpack.c.l.b16 %v267
    %v285 = vunpack.c.h.b16 %v267
    %v286 = vunpack.c.l.b16 %v268
    %v287 = vunpack.c.h.b16 %v268
    %v288 = vunpack.c.l.b16 %v269
    %v289 = vunpack.c.h.b16 %v269
    %v290 = vunpack.c.l.b16 %v270
    %v291 = vunpack.c.h.b16 %v270
    %v292 = vunpack.c.l.b16 %v271
    %v293 = vunpack.c.h.b16 %v271
    %v294 = vunpack.c.l.b16 %v272
    %v295 = vunpack.c.h.b16 %v272
    %v296 = vunpack.c.l.b16 %v273
    %v297 = vunpack.c.h.b16 %v273
    %v298 = vpack.c.b16 %v282, %v282
    %v299 = vpack.c.b16 %v283, %v283
    %v300 = vpack.c.b16 %v284, %v284
    %v301 = vpack.c.b16 %v285, %v285
    %v302 = vpack.c.b16 %v286, %v286
    %v303 = vpack.c.b16 %v287, %v287
    %v304 = vpack.c.b16 %v288, %v288
    %v305 = vpack.c.b16 %v289, %v289
    %v306 = vpack.c.b16 %v290, %v290
    %v307 = vpack.c.b16 %v291, %v291
    %v308 = vpack.c.b16 %v292, %v292
    %v309 = vpack.c.b16 %v293, %v293
    %v310 = vpack.c.b16 %v294, %v294
    %v311 = vpack.c.b16 %v295, %v295
    %v312 = vpack.c.b16 %v296, %v296
    %v313 = vpack.c.b16 %v297, %v297
    %330 = vst [vmem:[#allocation7] sm:$0xf] %v298
    %331 = vst [vmem:[#allocation7 + $0x4] sm:$0xf] %v299
    %332 = vst [vmem:[#allocation7 + $0x8] sm:$0xf] %v300
    %333 = vst [vmem:[#allocation7 + $0xc] sm:$0xf] %v301
    %334 = vst [vmem:[#allocation7 + $0x10] sm:$0xf] %v302
    %335 = vst [vmem:[#allocation7 + $0x14] sm:$0xf] %v303
    %336 = vst [vmem:[#allocation7 + $0x18] sm:$0xf] %v304
    %337 = vst [vmem:[#allocation7 + $0x1c] sm:$0xf] %v305
    %338 = vst [vmem:[#allocation7 + $0x20] sm:$0xf] %v306
    %339 = vst [vmem:[#allocation7 + $0x24] sm:$0xf] %v307
    %340 = vst [vmem:[#allocation7 + $0x28] sm:$0xf] %v308
    %341 = vst [vmem:[#allocation7 + $0x2c] sm:$0xf] %v309
    %342 = vst [vmem:[#allocation7 + $0x30] sm:$0xf] %v310
    %343 = vst [vmem:[#allocation7 + $0x34] sm:$0xf] %v311
    %344 = vst [vmem:[#allocation7 + $0x38] sm:$0xf] %v312
    %345 = vst [vmem:[#allocation7 + $0x3c] sm:$0xf] %v313
    // Predicated region
    $region18: #{tpu_custom_call.1} parent=1 // pred_check
      _
    $region19: #{tpu_custom_call.1} parent=1 // pred_check_branch
      %347 = sbr.rel (0) target = $region21
    $region20: #{tpu_custom_call.1} parent=1 // pred_region
      %s349 = ssub.s32 1024, 1024
      %350 = vsyncadd [#allocation4], %s349
      %s351 = sshll.u32 [#allocation7], 4
      %s352 = int_to_ptr.vmem [resolvable:$true] %s351
      %357 = dma.vmem_to_hbm [thread:$0]  %s352, 1024, %s2, [#allocation4], 64, 64, 4
    $region21: #{tpu_custom_call.1} parent=1 // pred_fallthru
      _
    // Predicated region
    $region22: #{tpu_custom_call.1} parent=1 // pred_check
      _
    $region23: #{tpu_custom_call.1} parent=1 // pred_check_branch
      %359 = sbr.rel (0) target = $region25
    $region24: #{tpu_custom_call.1} parent=1 // pred_region
      %360 = dma.done [#allocation4], 1024
    $region25: #{tpu_custom_call.1} parent=1 // pred_fallthru
      _
    %361 = vsyncpa [#allocation3], 1
    %362 = vsyncpa [#allocation6], 1
    %363 = vsyncpa [#allocation4], 1

</llo_original>
